<compile_context>
chip_gen: v5e
topology: v5e:2x2
jax: 0.10.0
libtpu: 0.0.40
codegen_flags: <defaults>
</compile_context>

<pallas_src>
from itertools import combinations

import jax
import jax.numpy as jnp
from jax.experimental import pallas as pl
from jax.experimental.pallas import tpu as pltpu


_TARGET_IN_BLOCK_BYTES = 4 * 1024 * 1024   # per input block (single buffer)
_VMEM_BUDGET_BYTES = 40 * 1024 * 1024      # double-buffered in+out (+scratch) budget
_VMEM_LIMIT_CAP = 64 * 1024 * 1024         # never request more than v7x physical VMEM


def _rup(x, m):
    return -(-x // m) * m


def _sublane(itemsize):
    return max(8, 32 // itemsize)


def _row_bytes(trailing_shape, dtype):
    """Lane/sublane-padded VMEM bytes of one batch row of a (TB, *trailing) block."""
    itemsize = jnp.dtype(dtype).itemsize
    dims = list(trailing_shape)
    if len(dims) == 0:
        return 128 * itemsize
    if len(dims) == 1:                       # (TB, d): TB on sublanes, d on lanes
        return _rup(dims[0], 128) * itemsize
    lead = 1
    for d in dims[:-2]:
        lead *= d
    return lead * _rup(dims[-2], _sublane(itemsize)) * _rup(dims[-1], 128) * itemsize


def _choose_tb(batch, in_row, out_row, extra_row):
    """Byte-budgeted batch tile, multiple of 8 (or == batch for tiny batches)."""
    per_row = 2 * (in_row + out_row) + extra_row         # double-buffered in/out + scratch
    budget_rows = max(8, _VMEM_BUDGET_BYTES // per_row)
    target_rows = max(8, _TARGET_IN_BLOCK_BYTES // max(in_row, 1))
    tb = int(min(budget_rows, target_rows))
    tb = max(8, (tb // 8) * 8)
    if batch <= tb:
        if batch > 16:                                    # keep >=2 steps for v7x megacore
            tb = _rup(-(-batch // 2), 8)
        else:
            tb = batch                                    # full batch in one block
    return tb


# ---------------------------------------------------------------------------
# Kernel bodies. Each grid step sees a (TB, F, E) slab of embeddings in VMEM.
# ---------------------------------------------------------------------------

def _bi_interaction(x):
    """0.5 * ((sum_f x)^2 - sum_f x^2), accumulated in f32.  x: (TB, F, E)."""
    x = x.astype(jnp.float32)
    s = jnp.sum(x, axis=1)            # (TB, E)  sublane-axis reduce
    sq = jnp.sum(x * x, axis=1)       # (TB, E)
    return 0.5 * (s * s - sq)         # (TB, E)


def _sum_pool_kernel(x_ref, o_ref):
    bi = _bi_interaction(x_ref[...])
    o_ref[...] = jnp.sum(bi, axis=-1, keepdims=True).astype(o_ref.dtype)   # (TB, 1)


def _bi_pool_kernel(x_ref, o_ref):
    o_ref[...] = _bi_interaction(x_ref[...]).astype(o_ref.dtype)           # (TB, E)


def _make_inner_product_kernel(num_fields):
    f = num_fields

    def kernel(x_ref, o_ref):
        x = x_ref[...].astype(jnp.float32)                        # (TB, F, E)
        gram = jnp.einsum('bfe,bge->bfg', x, x,
                          preferred_element_type=jnp.float32)     # (TB, F, F) on MXU
        # Upper triangle in combinations(range(F), 2) order, packed into one
        # lane-dense (TB, P) store (F-1 contiguous slices, no per-pair ops).
        chunks = [gram[:, i, i + 1:] for i in range(f - 1)]
        o_ref[...] = jnp.concatenate(chunks, axis=-1).astype(o_ref.dtype)

    return kernel


def _make_elementwise_kernel(num_fields):
    f = num_fields

    def kernel(x_ref, o_ref):
        x = x_ref[...]                                            # (TB, F, E)
        off = 0
        for i in range(f - 1):                                    # F-1 groups, not P pairs
            cnt = f - 1 - i
            o_ref[:, off:off + cnt, :] = (
                x[:, i:i + 1, :] * x[:, i + 1:, :]).astype(o_ref.dtype)
            off += cnt

    return kernel


# ---------------------------------------------------------------------------
# Wrappers.
# ---------------------------------------------------------------------------

def _run(kernel, x, tb, out_block, out_shape, out_dtype, vmem_limit):
    b, f, e = x.shape
    grid = (pl.cdiv(b, tb),)
    out_index_map = lambda blk: (blk,) + (0,) * (len(out_block) - 1)
    return pl.pallas_call(
        kernel,
        out_shape=jax.ShapeDtypeStruct(out_shape, out_dtype),
        grid_spec=pltpu.PrefetchScalarGridSpec(
            num_scalar_prefetch=0,
            grid=grid,
            in_specs=[pl.BlockSpec((tb, f, e), lambda blk: (blk, 0, 0))],
            out_specs=pl.BlockSpec(out_block, out_index_map),
        ),
        compiler_params=pltpu.CompilerParams(
            dimension_semantics=("parallel",),      # batch blocks shard across TCs
            vmem_limit_bytes=vmem_limit),
    )(x)


def inner_product_layer(feature_emb, output="product_sum_pooling"):
    """Pallas TPU implementation of InnerProductLayer.forward (dtype-preserving)."""
    if output not in ("product_sum_pooling", "Bi_interaction_pooling",
                      "inner_product", "elementwise_product"):
        raise ValueError("InnerProductLayer output={} is not supported.".format(output))

    b, f, e = feature_emb.shape
    dtype = feature_emb.dtype
    in_row = _row_bytes((f, e), dtype)
    # f32 in-register copy of the input block (only when input is narrower than f32).
    x_f32_row = 0 if dtype == jnp.float32 else _row_bytes((f, e), jnp.float32)

    if output == "product_sum_pooling":
        out_trail, extra = (1,), x_f32_row
    elif output == "Bi_interaction_pooling":
        out_trail, extra = (e,), x_f32_row
    elif output == "inner_product":
        p = (f * (f - 1)) // 2
        gram_row = _row_bytes((f, f), jnp.float32)
        out_trail = (p,)
        extra = x_f32_row + gram_row + _row_bytes((p,), jnp.float32)
    else:  # elementwise_product
        p = (f * (f - 1)) // 2
        out_trail, extra = (p, e), 0

    out_row = _row_bytes(out_trail, dtype)
    tb = _choose_tb(b, in_row, out_row, extra)
    est = tb * (2 * (in_row + out_row) + extra)
    vmem_limit = int(min(_VMEM_LIMIT_CAP,
                         max(32 * 1024 * 1024, est + 8 * 1024 * 1024)))

    out_block = (tb,) + out_trail
    out_shape = (b,) + out_trail

    if output == "product_sum_pooling":
        return _run(_sum_pool_kernel, feature_emb, tb, out_block, out_shape, dtype, vmem_limit)
    if output == "Bi_interaction_pooling":
        return _run(_bi_pool_kernel, feature_emb, tb, out_block, out_shape, dtype, vmem_limit)
    if output == "inner_product":
        return _run(_make_inner_product_kernel(f), feature_emb, tb, out_block, out_shape,
                    dtype, vmem_limit)
    return _run(_make_elementwise_kernel(f), feature_emb, tb, out_block, out_shape,
                dtype, vmem_limit)


# ---------------------------------------------------------------------------
# Pure-JAX reference (mirrors the PyTorch forward) + self-test.
# ---------------------------------------------------------------------------

def _reference(feature_emb, output):
    if output in ("product_sum_pooling", "Bi_interaction_pooling"):
        sum_of_square = jnp.sum(feature_emb, axis=1) ** 2
        square_of_sum = jnp.sum(feature_emb ** 2, axis=1)
        bi = 0.5 * (sum_of_square - square_of_sum)
        if output == "Bi_interaction_pooling":
            return bi
        return jnp.sum(bi, axis=-1, keepdims=True)
    f = feature_emb.shape[1]
    p_idx, q_idx = zip(*combinations(range(f), 2))
    emb1 = feature_emb[:, jnp.asarray(p_idx), :]
    emb2 = feature_emb[:, jnp.asarray(q_idx), :]
    if output == "elementwise_product":
        return emb1 * emb2
    return jnp.sum(emb1 * emb2, axis=-1)   # inner_product, upper-triangle order


if __name__ == "__main__":
    # B deliberately not a multiple of the batch tile -> exercises the ragged
    # (un-padded) last block; valid rows must still match the reference exactly.
    B, F, E = 20, 8, 16
    key = jax.random.PRNGKey(0)
    feature_emb = jax.random.normal(key, (B, F, E), dtype=jnp.float32)

    for mode in ("product_sum_pooling", "Bi_interaction_pooling",
                 "inner_product", "elementwise_product"):
        out = jax.block_until_ready(inner_product_layer(feature_emb, mode))
        ref = _reference(feature_emb, mode)
        assert out.shape == ref.shape, (mode, out.shape, ref.shape)
        assert out.dtype == feature_emb.dtype, (mode, out.dtype)
        assert jnp.allclose(out, ref, atol=1e-4, rtol=1e-4), f"mismatch in {mode}"

    print("KERNEL_OK")
</pallas_src>

<mosaic_0001>
module attributes {stable_mosaic.version = 11 : i64} {
  func.func @_sum_pool_kernel(%arg0: i32, %arg1: memref<16x8x16xf32, #tpu.memory_space<vmem>>, %arg2: memref<16x1xf32, #tpu.memory_space<vmem>>) attributes {dimension_semantics = [#tpu.dimension_semantics<parallel>], iteration_bounds = array<i64: 2>, scalar_prefetch = 0 : i64, scratch_operands = 0 : i64, tpu.core_type = #tpu.core_type<tc>, window_params = [{transform_indices = @transform_0, window_bounds = array<i64: 16, 8, 16>}, {transform_indices = @transform_1, window_bounds = array<i64: 16, 1>}]} {
    %c0 = arith.constant 0 : index
    %c0_0 = arith.constant 0 : index
    %c0_1 = arith.constant 0 : index
    %0 = vector.load %arg1[%c0, %c0_0, %c0_1] : memref<16x8x16xf32, #tpu.memory_space<vmem>>, vector<16x8x16xf32>
    %cst = arith.constant dense<0.000000e+00> : vector<16x16xf32>
    %1 = vector.multi_reduction <add>, %0, %cst [1] : vector<16x8x16xf32> to vector<16x16xf32>
    %2 = arith.mulf %0, %0 : vector<16x8x16xf32>
    %cst_2 = arith.constant dense<0.000000e+00> : vector<16x16xf32>
    %3 = vector.multi_reduction <add>, %2, %cst_2 [1] : vector<16x8x16xf32> to vector<16x16xf32>
    %4 = arith.mulf %1, %1 : vector<16x16xf32>
    %5 = arith.subf %4, %3 : vector<16x16xf32>
    %cst_3 = arith.constant 5.000000e-01 : f32
    %6 = vector.broadcast %cst_3 : f32 to vector<16x16xf32>
    %7 = arith.mulf %6, %5 : vector<16x16xf32>
    %cst_4 = arith.constant dense<0.000000e+00> : vector<16xf32>
    %8 = vector.multi_reduction <add>, %7, %cst_4 [1] : vector<16x16xf32> to vector<16xf32>
    %9 = vector.shape_cast %8 : vector<16xf32> to vector<16x1xf32>
    %c0_5 = arith.constant 0 : index
    %c0_6 = arith.constant 0 : index
    %10 = vector.load %arg2[%c0_5, %c0_6] : memref<16x1xf32, #tpu.memory_space<vmem>>, vector<16x1xf32>
    tpu.vector_store %arg2[%c0_5, %c0_6], %9 {strides = array<i32>} : memref<16x1xf32, #tpu.memory_space<vmem>>, vector<16x1xf32>,
    return
  }
  func.func @transform_0(%arg0: i32) -> (i32, i32, i32) {
    %c0_i32 = arith.constant 0 : i32
    %c0_i32_0 = arith.constant 0 : i32
    %c0_i32_1 = arith.constant 0 : i32
    return %arg0, %c0_i32, %c0_i32_0 : i32, i32, i32
  }
  func.func @transform_1(%arg0: i32) -> (i32, i32) {
    %c0_i32 = arith.constant 0 : i32
    %c0_i32_0 = arith.constant 0 : i32
    return %arg0, %c0_i32 : i32, i32
  }
}

</mosaic_0001>

<llo_original>
// kernel: tpu_custom_call.1
$region0: #{tpu_custom_call.1}
  #allocation0 [shape = 'u32[]', space=smem, size = 0x4, offset = 0x4, fixed_abs, tag = 'smem constant byte address 0x4 - core index']
  #allocation1 [shape = 'u32[72,128]{1,0:T(1,128)}', space=vmem, size = 0x9000, scoped, tag = 'internal scratch']
  %s0 = inlined_call_operand.vmem [shape: f32[20,8,16], index: 0, kind: input, shape index: {}]
  %s1 = inlined_call_operand.vmem [shape: f32[20,1], index: 1, kind: output, shape index: {}]
  %s2 = sld [smem:[#allocation0]]
  $region85: #{tpu_custom_call.1} parent=0
    _
  %s4 = ssub.s32 1, %s2
  %s5 = scalar_select 0, %s4, %s2
  $region1: #{tpu_custom_call.1} parent=0
    #allocation2 [shape = 'u8[16384]{0}', space=vmem, size = 0x4000, scoped, tag = 'output window, operand 0']
    loop: start=0, step=1, limit=4
    $region2: #{tpu_custom_call.1} parent=1 // loop_pre_header
      _
    $region3: #{tpu_custom_call.1} parent=1 // loop_header
      %s7 = sphi 0, %s11
      %p8 = scmp.ge.s32.totalorder %s7, 4
      %s17 = sphi 0, %s19
      %s20 = sphi 0, %s17
      %s21 = sphi 0, %s20
      %s37 = sphi 0, %s21
      %s43 = sphi 0, %s45
      %s46 = sphi 0, %s43
      %s47 = sphi 0, %s46
      %s63 = sphi 0, %s47
    $region4: #{tpu_custom_call.1} parent=1 // loop_header_branch
      %10 = sbr.rel (%p8) target = $region8
    $region5: #{tpu_custom_call.1} parent=1 // loop_body
      %s12 = ssub.s32 %s7, 1
      %s13 = ssub.s32 %s7, 2
      %s14 = sadd.s32 %s7, 1
      %s15 = ssub.s32 %s7, %s14
      %p16 = scmp.eq.s32.totalorder %s15, 0
      %s18 = sadd.s32 %s17, 1
      %s19 = scalar_select %p16, %s17, %s18
      %p22 = pneg %p16
      %p23 = scmp.eq.s32.totalorder %s7, 1
      %p24 = por %p22, %p23
      %p25 = scmp.ne.s32.totalorder %s17, %s20
      %p26 = scmp.eq.s32.totalorder %s7, 0
      %p27 = por %p25, %p26
      %p28 = scmp.ne.s32.totalorder %s17, %s20
      %p29 = scmp.eq.s32.totalorder %s12, 1
      %p30 = por %p28, %p29
      %p31 = scmp.ne.s32.totalorder %s20, %s21
      %p32 = scmp.eq.s32.totalorder %s12, 0
      %p33 = por %p31, %p32
      %p34 = scmp.ne.s32.totalorder %s20, %s21
      %p35 = scmp.eq.s32.totalorder %s13, 1
      %p36 = por %p34, %p35
      %p38 = scmp.ne.s32.totalorder %s21, %s37
      %p39 = scmp.eq.s32.totalorder %s13, 0
      %p40 = por %p38, %p39
      %s41 = ssub.s32 %s7, %s14
      %p42 = scmp.eq.s32.totalorder %s41, 0
      %s44 = sadd.s32 %s43, 1
      %s45 = scalar_select %p42, %s43, %s44
      %p48 = pneg %p42
      %p49 = scmp.eq.s32.totalorder %s7, 1
      %p50 = por %p48, %p49
      %p51 = scmp.ne.s32.totalorder %s43, %s46
      %p52 = scmp.eq.s32.totalorder %s7, 0
      %p53 = por %p51, %p52
      %p54 = scmp.ne.s32.totalorder %s43, %s46
      %p55 = scmp.eq.s32.totalorder %s12, 1
      %p56 = por %p54, %p55
      %p57 = scmp.ne.s32.totalorder %s46, %s47
      %p58 = scmp.eq.s32.totalorder %s12, 0
      %p59 = por %p57, %p58
      %p60 = scmp.ne.s32.totalorder %s46, %s47
      %p61 = scmp.eq.s32.totalorder %s13, 1
      %p62 = por %p60, %p61
      %p64 = scmp.ne.s32.totalorder %s47, %s63
      %p65 = scmp.eq.s32.totalorder %s13, 0
      %p66 = por %p64, %p65
      %p67 = scmp.le.s32.totalorder 1, %s7
      %p68 = scmp.lt.s32.totalorder %s7, 3
      %p69 = pnand %p67, %p68
      %p70 = pneg %p69
      // Predicated region
      $region9: #{tpu_custom_call.1} parent=5 // pred_check
        _
      $region10: #{tpu_custom_call.1} parent=5 // pred_check_branch
        %72 = sbr.rel (%p69) target = $region12
      $region11: #{tpu_custom_call.1} parent=5 // pred_region
        %s73 = ssub.s32 %s7, 1
      $region12: #{tpu_custom_call.1} parent=5 // pred_fallthru
        _
      %p74 = scmp.lt.s32.totalorder %s7, 2
      // Predicated region
      $region13: #{tpu_custom_call.1} parent=5 // pred_check
        %p75 = pneg %p74
      $region14: #{tpu_custom_call.1} parent=5 // pred_check_branch
        %77 = sbr.rel (%p75) target = $region16
      $region15: #{tpu_custom_call.1} parent=5 // pred_region
        // Predicated region
        $region17: #{tpu_custom_call.1} parent=15 // pred_check
          %p78 = pneg %p27
        $region18: #{tpu_custom_call.1} parent=15 // pred_check_branch
          %80 = sbr.rel (%p78) target = $region20
        $region19: #{tpu_custom_call.1} parent=15 // pred_region
          %s81 = smul.u32 16, %s7
          %s82 = ssub.s32 20, %s81
          %p83 = scmp.lt.s32.totalorder %s82, 16
          %s84 = scalar_select %p83, %s82, 16
          %s85 = smul.u32 8, %s84
          %p86 = scmp.lt.s32.totalorder %s81, 19
          %s87 = scalar_select %p86, %s81, 19
          %s88 = smul.addr %s87, 8
          %s89 = scalar_lea.vmem %s0, %s88
          %s90 = smul.u32 16, %s7
          %s91 = ssub.s32 20, %s90
          %p92 = scmp.lt.s32.totalorder %s91, 16
          %s93 = scalar_select %p92, %s91, 16
          %s94 = smul.u32 8, %s93
        $region20: #{tpu_custom_call.1} parent=15 // pred_fallthru
          _
      $region16: #{tpu_custom_call.1} parent=5 // pred_fallthru
        _
      %p95 = scmp.le.s32.totalorder 1, %s7
      %p96 = scmp.lt.s32.totalorder %s7, 3
      %p97 = pnand %p95, %p96
      %p98 = pneg %p97
      // Predicated region
      $region21: #{tpu_custom_call.1} parent=5 // pred_check
        _
      $region22: #{tpu_custom_call.1} parent=5 // pred_check_branch
        %100 = sbr.rel (%p97) target = $region24
      $region23: #{tpu_custom_call.1} parent=5 // pred_region
        %s101 = ssub.s32 %s7, 1
        %s102 = smul.u32 16, %s12
        %s103 = ssub.s32 20, %s102
        %p104 = scmp.lt.s32.totalorder %s103, 16
        %s105 = scalar_select %p104, %s103, 16
        %s106 = smul.u32 8, %s105
        %p107 = scmp.lt.s32.totalorder %s102, 19
        %s108 = scalar_select %p107, %s102, 19
        %s109 = smul.addr %s108, 8
        %s110 = scalar_lea.vmem %s0, %s109
        %p111 = pneg %p33
        %p112 = pneg %p30
        %p113 = pneg %p59
        %p114 = pneg %p56
        %s115 = sand.u32 %s46, 1
        %s116 = sand.u32 %s46, 1
        %s117 = smul.addr %s116, 16
        %s118 = scalar_lea.vmem [#allocation2], %s117
        %s119 = smul.u32 16, %s12
        %s120 = ssub.s32 20, %s119
        %p121 = scmp.lt.s32.totalorder %s120, 16
        %s122 = scalar_select %p121, %s120, 16
        %s123 = smul.u32 8, %s122
        %p124 = scmp.lt.s32.totalorder %s119, 19
        %s125 = scalar_select %p124, %s119, 19
        %s126 = smul.addr %s125, 8
        %s127 = scalar_lea.vmem %s0, %s126
        %s128 = smul.u32 16, %s12
        %s129 = ssub.s32 20, %s128
        %p130 = scmp.lt.s32.totalorder %s129, 16
        %s131 = scalar_select %p130, %s129, 16
        %s132 = smul.u32 8, %s131
        %s133 = smul.u32 2, %s12
        %s134 = ssub.s32 3, %s133
        %p135 = scmp.lt.s32.totalorder %s134, 2
        %s136 = scalar_select %p135, %s134, 2
        %s137 = smul.u32 8, %s136
        %v138 = vld [vmem:[%s127] sm:$0xff]
        %v139 = vld [vmem:[%s127 + $0x8] sm:$0xff]
        %v140 = vld [vmem:[%s127 + $0x10] sm:$0xff]
        %v141 = vld [vmem:[%s127 + $0x18] sm:$0xff]
        %v142 = vld [vmem:[%s127 + $0x20] sm:$0xff]
        %v143 = vld [vmem:[%s127 + $0x28] sm:$0xff]
        %v144 = vld [vmem:[%s127 + $0x30] sm:$0xff]
        %v145 = vld [vmem:[%s127 + $0x38] sm:$0xff]
        %v146 = vld [vmem:[%s127 + $0x40] sm:$0xff]
        %v147 = vld [vmem:[%s127 + $0x48] sm:$0xff]
        %v148 = vld [vmem:[%s127 + $0x50] sm:$0xff]
        %v149 = vld [vmem:[%s127 + $0x58] sm:$0xff]
        %v150 = vld [vmem:[%s127 + $0x60] sm:$0xff]
        %v151 = vld [vmem:[%s127 + $0x68] sm:$0xff]
        %v152 = vld [vmem:[%s127 + $0x70] sm:$0xff]
        %v153 = vld [vmem:[%s127 + $0x78] sm:$0xff]
        %vm154 = vcmask 130048
        %v155 = vsel %vm154, %v138, 0.0
        %v156 = vrot.slane %v155, 4
        %v157 = vadd.f32 %v155, %v156
        %v158 = vrot.slane %v157, 2
        %v159 = vadd.f32 %v157, %v158
        %v160 = vrot.slane %v159, 1
        %v161 = vadd.f32 %v159, %v160
        %v162 = vsel %vm154, %v139, 0.0
        %v163 = vrot.slane %v162, 4
        %v164 = vadd.f32 %v162, %v163
        %v165 = vrot.slane %v164, 2
        %v166 = vadd.f32 %v164, %v165
        %v167 = vrot.slane %v166, 1
        %v168 = vadd.f32 %v166, %v167
        %v169 = vsel %vm154, %v140, 0.0
        %v170 = vrot.slane %v169, 4
        %v171 = vadd.f32 %v169, %v170
        %v172 = vrot.slane %v171, 2
        %v173 = vadd.f32 %v171, %v172
        %v174 = vrot.slane %v173, 1
        %v175 = vadd.f32 %v173, %v174
        %v176 = vsel %vm154, %v141, 0.0
        %v177 = vrot.slane %v176, 4
        %v178 = vadd.f32 %v176, %v177
        %v179 = vrot.slane %v178, 2
        %v180 = vadd.f32 %v178, %v179
        %v181 = vrot.slane %v180, 1
        %v182 = vadd.f32 %v180, %v181
        %v183 = vsel %vm154, %v142, 0.0
        %v184 = vrot.slane %v183, 4
        %v185 = vadd.f32 %v183, %v184
        %v186 = vrot.slane %v185, 2
        %v187 = vadd.f32 %v185, %v186
        %v188 = vrot.slane %v187, 1
        %v189 = vadd.f32 %v187, %v188
        %v190 = vsel %vm154, %v143, 0.0
        %v191 = vrot.slane %v190, 4
        %v192 = vadd.f32 %v190, %v191
        %v193 = vrot.slane %v192, 2
        %v194 = vadd.f32 %v192, %v193
        %v195 = vrot.slane %v194, 1
        %v196 = vadd.f32 %v194, %v195
        %v197 = vsel %vm154, %v144, 0.0
        %v198 = vrot.slane %v197, 4
        %v199 = vadd.f32 %v197, %v198
        %v200 = vrot.slane %v199, 2
        %v201 = vadd.f32 %v199, %v200
        %v202 = vrot.slane %v201, 1
        %v203 = vadd.f32 %v201, %v202
        %v204 = vsel %vm154, %v145, 0.0
        %v205 = vrot.slane %v204, 4
        %v206 = vadd.f32 %v204, %v205
        %v207 = vrot.slane %v206, 2
        %v208 = vadd.f32 %v206, %v207
        %v209 = vrot.slane %v208, 1
        %v210 = vadd.f32 %v208, %v209
        %v211 = vsel %vm154, %v146, 0.0
        %v212 = vrot.slane %v211, 4
        %v213 = vadd.f32 %v211, %v212
        %v214 = vrot.slane %v213, 2
        %v215 = vadd.f32 %v213, %v214
        %v216 = vrot.slane %v215, 1
        %v217 = vadd.f32 %v215, %v216
        %v218 = vsel %vm154, %v147, 0.0
        %v219 = vrot.slane %v218, 4
        %v220 = vadd.f32 %v218, %v219
        %v221 = vrot.slane %v220, 2
        %v222 = vadd.f32 %v220, %v221
        %v223 = vrot.slane %v222, 1
        %v224 = vadd.f32 %v222, %v223
        %v225 = vsel %vm154, %v148, 0.0
        %v226 = vrot.slane %v225, 4
        %v227 = vadd.f32 %v225, %v226
        %v228 = vrot.slane %v227, 2
        %v229 = vadd.f32 %v227, %v228
        %v230 = vrot.slane %v229, 1
        %v231 = vadd.f32 %v229, %v230
        %v232 = vsel %vm154, %v149, 0.0
        %v233 = vrot.slane %v232, 4
        %v234 = vadd.f32 %v232, %v233
        %v235 = vrot.slane %v234, 2
        %v236 = vadd.f32 %v234, %v235
        %v237 = vrot.slane %v236, 1
        %v238 = vadd.f32 %v236, %v237
        %v239 = vsel %vm154, %v150, 0.0
        %v240 = vrot.slane %v239, 4
        %v241 = vadd.f32 %v239, %v240
        %v242 = vrot.slane %v241, 2
        %v243 = vadd.f32 %v241, %v242
        %v244 = vrot.slane %v243, 1
        %v245 = vadd.f32 %v243, %v244
        %v246 = vsel %vm154, %v151, 0.0
        %v247 = vrot.slane %v246, 4
        %v248 = vadd.f32 %v246, %v247
        %v249 = vrot.slane %v248, 2
        %v250 = vadd.f32 %v248, %v249
        %v251 = vrot.slane %v250, 1
        %v252 = vadd.f32 %v250, %v251
        %v253 = vsel %vm154, %v152, 0.0
        %v254 = vrot.slane %v253, 4
        %v255 = vadd.f32 %v253, %v254
        %v256 = vrot.slane %v255, 2
        %v257 = vadd.f32 %v255, %v256
        %v258 = vrot.slane %v257, 1
        %v259 = vadd.f32 %v257, %v258
        %v260 = vsel %vm154, %v153, 0.0
        %v261 = vrot.slane %v260, 4
        %v262 = vadd.f32 %v260, %v261
        %v263 = vrot.slane %v262, 2
        %v264 = vadd.f32 %v262, %v263
        %v265 = vrot.slane %v264, 1
        %v266 = vadd.f32 %v264, %v265
        %v267 = vmul.f32 %v138, %v138
        %v268 = vmul.f32 %v139, %v139
        %v269 = vmul.f32 %v140, %v140
        %v270 = vmul.f32 %v141, %v141
        %v271 = vmul.f32 %v142, %v142
        %v272 = vmul.f32 %v143, %v143
        %v273 = vmul.f32 %v144, %v144
        %v274 = vmul.f32 %v145, %v145
        %v275 = vmul.f32 %v146, %v146
        %v276 = vmul.f32 %v147, %v147
        %v277 = vmul.f32 %v148, %v148
        %v278 = vmul.f32 %v149, %v149
        %v279 = vmul.f32 %v150, %v150
        %v280 = vmul.f32 %v151, %v151
        %v281 = vmul.f32 %v152, %v152
        %v282 = vmul.f32 %v153, %v153
        %v283 = vsel %vm154, %v267, 0.0
        %v284 = vrot.slane %v283, 4
        %v285 = vadd.f32 %v283, %v284
        %v286 = vrot.slane %v285, 2
        %v287 = vadd.f32 %v285, %v286
        %v288 = vrot.slane %v287, 1
        %v289 = vadd.f32 %v287, %v288
        %v290 = vsel %vm154, %v268, 0.0
        %v291 = vrot.slane %v290, 4
        %v292 = vadd.f32 %v290, %v291
        %v293 = vrot.slane %v292, 2
        %v294 = vadd.f32 %v292, %v293
        %v295 = vrot.slane %v294, 1
        %v296 = vadd.f32 %v294, %v295
        %v297 = vsel %vm154, %v269, 0.0
        %v298 = vrot.slane %v297, 4
        %v299 = vadd.f32 %v297, %v298
        %v300 = vrot.slane %v299, 2
        %v301 = vadd.f32 %v299, %v300
        %v302 = vrot.slane %v301, 1
        %v303 = vadd.f32 %v301, %v302
        %v304 = vsel %vm154, %v270, 0.0
        %v305 = vrot.slane %v304, 4
        %v306 = vadd.f32 %v304, %v305
        %v307 = vrot.slane %v306, 2
        %v308 = vadd.f32 %v306, %v307
        %v309 = vrot.slane %v308, 1
        %v310 = vadd.f32 %v308, %v309
        %v311 = vsel %vm154, %v271, 0.0
        %v312 = vrot.slane %v311, 4
        %v313 = vadd.f32 %v311, %v312
        %v314 = vrot.slane %v313, 2
        %v315 = vadd.f32 %v313, %v314
        %v316 = vrot.slane %v315, 1
        %v317 = vadd.f32 %v315, %v316
        %v318 = vsel %vm154, %v272, 0.0
        %v319 = vrot.slane %v318, 4
        %v320 = vadd.f32 %v318, %v319
        %v321 = vrot.slane %v320, 2
        %v322 = vadd.f32 %v320, %v321
        %v323 = vrot.slane %v322, 1
        %v324 = vadd.f32 %v322, %v323
        %v325 = vsel %vm154, %v273, 0.0
        %v326 = vrot.slane %v325, 4
        %v327 = vadd.f32 %v325, %v326
        %v328 = vrot.slane %v327, 2
        %v329 = vadd.f32 %v327, %v328
        %v330 = vrot.slane %v329, 1
        %v331 = vadd.f32 %v329, %v330
        %v332 = vsel %vm154, %v274, 0.0
        %v333 = vrot.slane %v332, 4
        %v334 = vadd.f32 %v332, %v333
        %v335 = vrot.slane %v334, 2
        %v336 = vadd.f32 %v334, %v335
        %v337 = vrot.slane %v336, 1
        %v338 = vadd.f32 %v336, %v337
        %v339 = vsel %vm154, %v275, 0.0
        %v340 = vrot.slane %v339, 4
        %v341 = vadd.f32 %v339, %v340
        %v342 = vrot.slane %v341, 2
        %v343 = vadd.f32 %v341, %v342
        %v344 = vrot.slane %v343, 1
        %v345 = vadd.f32 %v343, %v344
        %v346 = vsel %vm154, %v276, 0.0
        %v347 = vrot.slane %v346, 4
        %v348 = vadd.f32 %v346, %v347
        %v349 = vrot.slane %v348, 2
        %v350 = vadd.f32 %v348, %v349
        %v351 = vrot.slane %v350, 1
        %v352 = vadd.f32 %v350, %v351
        %v353 = vsel %vm154, %v277, 0.0
        %v354 = vrot.slane %v353, 4
        %v355 = vadd.f32 %v353, %v354
        %v356 = vrot.slane %v355, 2
        %v357 = vadd.f32 %v355, %v356
        %v358 = vrot.slane %v357, 1
        %v359 = vadd.f32 %v357, %v358
        %v360 = vsel %vm154, %v278, 0.0
        %v361 = vrot.slane %v360, 4
        %v362 = vadd.f32 %v360, %v361
        %v363 = vrot.slane %v362, 2
        %v364 = vadd.f32 %v362, %v363
        %v365 = vrot.slane %v364, 1
        %v366 = vadd.f32 %v364, %v365
        %v367 = vsel %vm154, %v279, 0.0
        %v368 = vrot.slane %v367, 4
        %v369 = vadd.f32 %v367, %v368
        %v370 = vrot.slane %v369, 2
        %v371 = vadd.f32 %v369, %v370
        %v372 = vrot.slane %v371, 1
        %v373 = vadd.f32 %v371, %v372
        %v374 = vsel %vm154, %v280, 0.0
        %v375 = vrot.slane %v374, 4
        %v376 = vadd.f32 %v374, %v375
        %v377 = vrot.slane %v376, 2
        %v378 = vadd.f32 %v376, %v377
        %v379 = vrot.slane %v378, 1
        %v380 = vadd.f32 %v378, %v379
        %v381 = vsel %vm154, %v281, 0.0
        %v382 = vrot.slane %v381, 4
        %v383 = vadd.f32 %v381, %v382
        %v384 = vrot.slane %v383, 2
        %v385 = vadd.f32 %v383, %v384
        %v386 = vrot.slane %v385, 1
        %v387 = vadd.f32 %v385, %v386
        %v388 = vsel %vm154, %v282, 0.0
        %v389 = vrot.slane %v388, 4
        %v390 = vadd.f32 %v388, %v389
        %v391 = vrot.slane %v390, 2
        %v392 = vadd.f32 %v390, %v391
        %v393 = vrot.slane %v392, 1
        %v394 = vadd.f32 %v392, %v393
        %v395 = vmul.f32 %v161, %v161
        %v396 = vmul.f32 %v168, %v168
        %v397 = vmul.f32 %v175, %v175
        %v398 = vmul.f32 %v182, %v182
        %v399 = vmul.f32 %v189, %v189
        %v400 = vmul.f32 %v196, %v196
        %v401 = vmul.f32 %v203, %v203
        %v402 = vmul.f32 %v210, %v210
        %v403 = vmul.f32 %v217, %v217
        %v404 = vmul.f32 %v224, %v224
        %v405 = vmul.f32 %v231, %v231
        %v406 = vmul.f32 %v238, %v238
        %v407 = vmul.f32 %v245, %v245
        %v408 = vmul.f32 %v252, %v252
        %v409 = vmul.f32 %v259, %v259
        %v410 = vmul.f32 %v266, %v266
        %v411 = vsub.f32 %v395, %v289
        %v412 = vsub.f32 %v396, %v296
        %v413 = vsub.f32 %v397, %v303
        %v414 = vsub.f32 %v398, %v310
        %v415 = vsub.f32 %v399, %v317
        %v416 = vsub.f32 %v400, %v324
        %v417 = vsub.f32 %v401, %v331
        %v418 = vsub.f32 %v402, %v338
        %v419 = vsub.f32 %v403, %v345
        %v420 = vsub.f32 %v404, %v352
        %v421 = vsub.f32 %v405, %v359
        %v422 = vsub.f32 %v406, %v366
        %v423 = vsub.f32 %v407, %v373
        %v424 = vsub.f32 %v408, %v380
        %v425 = vsub.f32 %v409, %v387
        %v426 = vsub.f32 %v410, %v394
        %v427 = vmul.f32 %v411, 0.5
        %v428 = vmul.f32 %v412, 0.5
        %v429 = vmul.f32 %v413, 0.5
        %v430 = vmul.f32 %v414, 0.5
        %v431 = vmul.f32 %v415, 0.5
        %v432 = vmul.f32 %v416, 0.5
        %v433 = vmul.f32 %v417, 0.5
        %v434 = vmul.f32 %v418, 0.5
        %v435 = vmul.f32 %v419, 0.5
        %v436 = vmul.f32 %v420, 0.5
        %v437 = vmul.f32 %v421, 0.5
        %v438 = vmul.f32 %v422, 0.5
        %v439 = vmul.f32 %v423, 0.5
        %v440 = vmul.f32 %v424, 0.5
        %v441 = vmul.f32 %v425, 0.5
        %v442 = vmul.f32 %v426, 0.5
        %vm459 = vcmask 1041409
        %v460 = vsel %vm459, %v428, %v427
        %vm461 = vcmask 1042434
        %v462 = vsel %vm461, %v429, %v460
        %vm463 = vcmask 1043459
        %v464 = vsel %vm463, %v430, %v462
        %vm465 = vcmask 1044484
        %v466 = vsel %vm465, %v431, %v464
        %vm467 = vcmask 1045509
        %v468 = vsel %vm467, %v432, %v466
        %vm469 = vcmask 1046534
        %v470 = vsel %vm469, %v433, %v468
        %vm471 = vcmask 1047559
        %v472 = vsel %vm471, %v434, %v470
        %v473 = vsel %vm459, %v436, %v435
        %v474 = vsel %vm461, %v437, %v473
        %v475 = vsel %vm463, %v438, %v474
        %v476 = vsel %vm465, %v439, %v475
        %v477 = vsel %vm467, %v440, %v476
        %v478 = vsel %vm469, %v441, %v477
        %v479 = vsel %vm471, %v442, %v478
        %v482 = vsel %vm154, %v472, 0.0
        %483 = vadd.xlane.f32.xlu0 %v482
        %v484 = vpop.xlane.xlu0 %483
        %v485 = vsel %vm154, %v479, 0.0
        %486 = vadd.xlane.f32.xlu0 %v485
        %v487 = vpop.xlane.xlu0 %486
        %vm488 = vcmask 7168
        %489 = vst.msk [vmem:[%s118] sm:$0xff] %vm488, %v484
        %490 = vst.msk [vmem:[%s118 + $0x8] sm:$0xff] %vm488, %v487
        %s491 = sand.u32 %s46, 1
        %s492 = sand.u32 %s46, 1
        %s493 = smul.addr %s492, 16
        %s494 = scalar_lea.vmem [#allocation2], %s493
        // Predicated region
        $region25: #{tpu_custom_call.1} parent=23 // pred_check
          %p495 = pneg %p56
        $region26: #{tpu_custom_call.1} parent=23 // pred_check_branch
          %497 = sbr.rel (%p495) target = $region28
        $region27: #{tpu_custom_call.1} parent=23 // pred_region
          %s498 = smul.u32 2, %s12
          %s499 = ssub.s32 3, %s498
          %p500 = scmp.lt.s32.totalorder %s499, 2
          %s501 = scalar_select %p500, %s499, 2
          %s502 = smul.u32 8, %s501
          %p503 = scmp.ne.s32.totalorder 0, %s502
          %s504 = smul.addr %s498, 8
          %s505 = scalar_lea.vmem %s1, %s504
          // Predicated region
          $region29: #{tpu_custom_call.1} parent=27 // pred_check
            %p506 = pneg %p503
          $region30: #{tpu_custom_call.1} parent=27 // pred_check_branch
            %508 = sbr.rel (%p506) target = $region32
          $region31: #{tpu_custom_call.1} parent=27 // pred_region
            // Predicated region
            $region33: #{tpu_custom_call.1} parent=31 // pred_check
              _
            $region34: #{tpu_custom_call.1} parent=31 // pred_check_branch
              %510 = sbr.rel (0) target = $region36
            $region35: #{tpu_custom_call.1} parent=31 // pred_region
              // Predicated region
              $region55: #{tpu_custom_call.1} parent=35 // pred_check
                _
              $region56: #{tpu_custom_call.1} parent=35 // pred_check_branch
                %562 = sbr.rel (0) target = $region58
              $region57: #{tpu_custom_call.1} parent=35 // pred_region
                %s563 = sshrl.u32 %s501, 1
                // While loop
                $region59: #{tpu_custom_call.1} parent=57 // loop_pre_header
                  _
                $region60: #{tpu_custom_call.1} parent=57 // loop_header
                  %s565 = sphi 0, %s567
                  %p566 = scmp.ge.s32.totalorder %s565, %s563
                  %s570 = sphi 0, %s579
                  %s571 = sphi %s494, %s582
                  %s572 = sphi %s505, %s583
                $region61: #{tpu_custom_call.1} parent=57 // loop_header_branch
                  %569 = sbr.rel (%p566) target = $region65
                $region62: #{tpu_custom_call.1} parent=57 // loop_body
                  %v573 = vld [vmem:[%s571] sm:$0xff]
                  %574 = vst [vmem:[%s572] sm:$0xff] %v573
                  %v575 = vld [vmem:[%s571 + $0x8] sm:$0xff]
                  %576 = vst [vmem:[%s572 + $0x8] sm:$0xff] %v575
                  %s577 = sadd.s32 1, %s570
                  %p578 = scmp.ge.s32.totalorder %s577, %s563
                  %s579 = scalar_select %p578, 0, %s577
                  %s580 = smul.u32 %s579, 16
                  %s581 = smul.u32 %s579, 16
                  %s582 = scalar_lea.vmem %s494, %s580 [#allocation2]
                  %s583 = scalar_lea.vmem %s505, %s581
                $region63: #{tpu_custom_call.1} parent=57 // loop_footer
                  %s567 = sadd.s32 %s565, 1
                $region64: #{tpu_custom_call.1} parent=57 // loop_footer_branch
                  %564 = sbr.rel target = $region60
                $region65: #{tpu_custom_call.1} parent=57 // loop_exit
                  _
                %s584 = sshrl.u32 %s501, 1
                %s585 = sand.u32 %s501, 1
                %s586 = smul.u32 %s584, 2
                %s587 = smul.u32 8, %s586
                %s588 = scalar_lea.vmem %s494, %s587 [#allocation2]
                %s589 = smul.u32 8, %s586
                %s590 = scalar_lea.vmem %s505, %s589
                // While loop
                $region66: #{tpu_custom_call.1} parent=57 // loop_pre_header
                  _
                $region67: #{tpu_custom_call.1} parent=57 // loop_header
                  %s592 = sphi 0, %s594
                  %p593 = scmp.ge.s32.totalorder %s592, %s585
                  %s597 = sphi 0, %s604
                  %s598 = sphi %s588, %s607
                  %s599 = sphi %s590, %s608
                $region68: #{tpu_custom_call.1} parent=57 // loop_header_branch
                  %596 = sbr.rel (%p593) target = $region72
                $region69: #{tpu_custom_call.1} parent=57 // loop_body
                  %v600 = vld [vmem:[%s598] sm:$0xff]
                  %601 = vst [vmem:[%s599] sm:$0xff] %v600
                  %s602 = sadd.s32 1, %s597
                  %p603 = scmp.ge.s32.totalorder %s602, %s585
                  %s604 = scalar_select %p603, 0, %s602
                  %s605 = smul.u32 %s604, 8
                  %s606 = smul.u32 %s604, 8
                  %s607 = scalar_lea.vmem %s588, %s605 [#allocation2]
                  %s608 = scalar_lea.vmem %s590, %s606
                $region70: #{tpu_custom_call.1} parent=57 // loop_footer
                  %s594 = sadd.s32 %s592, 1
                $region71: #{tpu_custom_call.1} parent=57 // loop_footer_branch
                  %591 = sbr.rel target = $region67
                $region72: #{tpu_custom_call.1} parent=57 // loop_exit
                  _
              $region58: #{tpu_custom_call.1} parent=35 // pred_fallthru
                _
              // Predicated region
              $region73: #{tpu_custom_call.1} parent=35 // pred_check
                _
              $region74: #{tpu_custom_call.1} parent=35 // pred_check_branch
                %610 = sbr.rel target = $region76
              $region75: #{tpu_custom_call.1} parent=35 // pred_region
                _
              $region76: #{tpu_custom_call.1} parent=35 // pred_fallthru
                _
            $region36: #{tpu_custom_call.1} parent=31 // pred_fallthru
              _
            // Predicated region
            $region37: #{tpu_custom_call.1} parent=31 // pred_check
              _
            $region38: #{tpu_custom_call.1} parent=31 // pred_check_branch
              %512 = sbr.rel target = $region40
            $region39: #{tpu_custom_call.1} parent=31 // pred_region
              %s514 = ssub.s32 256, 1
              %s515 = sshrl.u32 %s501, 1
              // While loop
              $region41: #{tpu_custom_call.1} parent=39 // loop_pre_header
                _
              $region42: #{tpu_custom_call.1} parent=39 // loop_header
                %s517 = sphi 0, %s519
                %p518 = scmp.ge.s32.totalorder %s517, %s515
                %s522 = sphi 0, %s531
                %s523 = sphi %s494, %s534
                %s524 = sphi %s505, %s535
              $region43: #{tpu_custom_call.1} parent=39 // loop_header_branch
                %521 = sbr.rel (%p518) target = $region47
              $region44: #{tpu_custom_call.1} parent=39 // loop_body
                %v525 = vld [vmem:[%s523] sm:%s514]
                %526 = vst [vmem:[%s524] sm:%s514] %v525
                %v527 = vld [vmem:[%s523 + $0x8] sm:%s514]
                %528 = vst [vmem:[%s524 + $0x8] sm:%s514] %v527
                %s529 = sadd.s32 1, %s522
                %p530 = scmp.ge.s32.totalorder %s529, %s515
                %s531 = scalar_select %p530, 0, %s529
                %s532 = smul.u32 %s531, 16
                %s533 = smul.u32 %s531, 16
                %s534 = scalar_lea.vmem %s494, %s532 [#allocation2]
                %s535 = scalar_lea.vmem %s505, %s533
              $region45: #{tpu_custom_call.1} parent=39 // loop_footer
                %s519 = sadd.s32 %s517, 1
              $region46: #{tpu_custom_call.1} parent=39 // loop_footer_branch
                %516 = sbr.rel target = $region42
              $region47: #{tpu_custom_call.1} parent=39 // loop_exit
                _
              %s536 = sshrl.u32 %s501, 1
              %s537 = sand.u32 %s501, 1
              %s538 = smul.u32 %s536, 2
              %s539 = smul.u32 8, %s538
              %s540 = scalar_lea.vmem %s494, %s539 [#allocation2]
              %s541 = smul.u32 8, %s538
              %s542 = scalar_lea.vmem %s505, %s541
              // While loop
              $region48: #{tpu_custom_call.1} parent=39 // loop_pre_header
                _
              $region49: #{tpu_custom_call.1} parent=39 // loop_header
                %s544 = sphi 0, %s546
                %p545 = scmp.ge.s32.totalorder %s544, %s537
                %s549 = sphi 0, %s556
                %s550 = sphi %s540, %s559
                %s551 = sphi %s542, %s560
              $region50: #{tpu_custom_call.1} parent=39 // loop_header_branch
                %548 = sbr.rel (%p545) target = $region54
              $region51: #{tpu_custom_call.1} parent=39 // loop_body
                %v552 = vld [vmem:[%s550] sm:%s514]
                %553 = vst [vmem:[%s551] sm:%s514] %v552
                %s554 = sadd.s32 1, %s549
                %p555 = scmp.ge.s32.totalorder %s554, %s537
                %s556 = scalar_select %p555, 0, %s554
                %s557 = smul.u32 %s556, 8
                %s558 = smul.u32 %s556, 8
                %s559 = scalar_lea.vmem %s540, %s557 [#allocation2]
                %s560 = scalar_lea.vmem %s542, %s558
              $region52: #{tpu_custom_call.1} parent=39 // loop_footer
                %s546 = sadd.s32 %s544, 1
              $region53: #{tpu_custom_call.1} parent=39 // loop_footer_branch
                %543 = sbr.rel target = $region49
              $region54: #{tpu_custom_call.1} parent=39 // loop_exit
                _
            $region40: #{tpu_custom_call.1} parent=31 // pred_fallthru
              _
          $region32: #{tpu_custom_call.1} parent=27 // pred_fallthru
            _
          %611 = vnop
        $region28: #{tpu_custom_call.1} parent=23 // pred_fallthru
          _
      $region24: #{tpu_custom_call.1} parent=5 // pred_fallthru
        _
      %p612 = scmp.le.s32.totalorder 2, %s7
      // Predicated region
      $region77: #{tpu_custom_call.1} parent=5 // pred_check
        %p613 = pneg %p612
      $region78: #{tpu_custom_call.1} parent=5 // pred_check_branch
        %615 = sbr.rel (%p613) target = $region80
      $region79: #{tpu_custom_call.1} parent=5 // pred_region
        %s616 = ssub.s32 %s7, 2
        // Predicated region
        $region81: #{tpu_custom_call.1} parent=79 // pred_check
          %p617 = pneg %p62
        $region82: #{tpu_custom_call.1} parent=79 // pred_check_branch
          %619 = sbr.rel (%p617) target = $region84
        $region83: #{tpu_custom_call.1} parent=79 // pred_region
          %s620 = sand.u32 %s47, 1
          %s621 = sand.u32 %s47, 1
          %s622 = smul.addr %s621, 16
          %s623 = scalar_lea.vmem [#allocation2], %s622
        $region84: #{tpu_custom_call.1} parent=79 // pred_fallthru
          _
      $region80: #{tpu_custom_call.1} parent=5 // pred_fallthru
        _
    $region6: #{tpu_custom_call.1} parent=1 // loop_footer
      %s11 = sadd.s32 1, %s7
    $region7: #{tpu_custom_call.1} parent=1 // loop_footer_branch
      %6 = sbr.rel target = $region3
    $region8: #{tpu_custom_call.1} parent=1 // loop_exit
      _

</llo_original>
